<compile_context>
chip_gen: v7x
topology: tpu7x:2x2x1
jax: 0.10.0
libtpu: 0.0.40
codegen_flags: <defaults>
</compile_context>

<pallas_src>
import functools

import jax
import jax.numpy as jnp
import numpy as np
from jax import lax
from jax.experimental import pallas as pl
from jax.experimental.pallas import tpu as pltpu


def _base_conv1x1_kernel(x_ref, w_ref, b_ref, o_ref, *, apply_relu):
    """Fused 1x1 conv (+ folded BN) (+ ReLU) on lane-dense (block_n, HW) slabs.

    x_ref: (Nb, Cin,  HW)  VMEM
    w_ref: (Cout, Cin)     SMEM  (BN scale already folded into the rows)
    b_ref: (Cout,)         SMEM  (conv bias + BN shift folded)
    o_ref: (Nb, Cout, HW)  VMEM
    """
    cin = x_ref.shape[1]
    cout = o_ref.shape[1]

    for oc in range(cout):
        # Load the per-channel input slab inside the accumulate loop (no
        # up-front full-block materialisation -> bounded live ranges, stays
        # spill-free at the larger block sizes).
        acc = w_ref[oc, 0] * x_ref[:, 0, :].astype(jnp.float32)
        for c in range(1, cin):
            acc = acc + w_ref[oc, c] * x_ref[:, c, :].astype(jnp.float32)
        acc = acc + b_ref[oc]
        if apply_relu:
            acc = jnp.maximum(acc, 0.0)
        # Direct lane-dense per-channel store (HW is a multiple of 128).
        o_ref[:, oc, :] = acc.astype(o_ref.dtype)


def _choose_block_n(n):
    """Pick a batch block size: largest divisor of n that is a multiple of 8
    (capped at 64 so per-step acc/slab vreg usage stays modest), preferring
    >= 2 grid points so both v7x TensorCores get work.  Tiny n (no
    multiple-of-8 divisor) runs as a single grid step."""
    divisors = [d for d in range(1, n + 1) if n % d == 0]
    good = [d for d in divisors if d % 8 == 0 and d <= 64]
    if not good:
        return n
    bn = max(good)
    if bn == n:
        smaller = [d for d in good if d <= n // 2]
        if smaller:
            bn = max(smaller)
    return bn


def base_conv1x1_forward(x, p, *, bn=True, relu=True, eps=1e-5, block_n=None,
                         out_dtype=None):
    """x: (N, Cin, H, W).  p: dict with 'w' (Cout, Cin), optional 'bias'
    (Cout,), plus BN running stats / affine params if bn=True."""
    N, Cin, H, W = x.shape
    Cout = p["w"].shape[0]
    HW = H * W
    out_dtype = x.dtype if out_dtype is None else out_dtype

    if block_n is None:
        block_n = _choose_block_n(N)
    assert N % block_n == 0, "block_n must divide N"

    bias = p.get("bias")
    if bias is None:
        bias = jnp.zeros((Cout,), jnp.float32)

    # Fold BatchNorm (inference) into the weights / bias on the host.
    if bn:
        scale = p["bn_gamma"] / jnp.sqrt(p["bn_var"] + eps)
        w_eff = p["w"] * scale[:, None]
        b_eff = (bias - p["bn_mean"]) * scale + p["bn_beta"]
    else:
        w_eff = p["w"]
        b_eff = bias

    w_eff = w_eff.astype(jnp.float32)
    b_eff = b_eff.astype(jnp.float32)

    # Lane-dense flattening of the spatial dims (free: NCHW is contiguous).
    x_flat = x.reshape(N, Cin, HW)

    # Explicit VMEM budget: double-buffered in + out blocks, with headroom.
    # Cap at 64 MiB so the identical code also fits v7x (64 MiB physical VMEM).
    blk_bytes = block_n * HW * (Cin * x.dtype.itemsize
                                + Cout * jnp.dtype(out_dtype).itemsize)
    vmem_limit = int(min(64 * 2**20, max(8 * blk_bytes, 16 * 2**20)))

    smem = pl.BlockSpec(memory_space=pltpu.MemorySpace.SMEM)

    out_flat = pl.pallas_call(
        functools.partial(_base_conv1x1_kernel, apply_relu=relu),
        out_shape=jax.ShapeDtypeStruct((N, Cout, HW), out_dtype),
        grid=(N // block_n,),
        in_specs=[pl.BlockSpec((block_n, Cin, HW), lambda b: (b, 0, 0)),
                  smem, smem],
        out_specs=pl.BlockSpec((block_n, Cout, HW), lambda b: (b, 0, 0)),
        compiler_params=pltpu.CompilerParams(
            dimension_semantics=("parallel",),
            vmem_limit_bytes=vmem_limit),
    )(x_flat, w_eff, b_eff)

    return out_flat.reshape(N, Cout, H, W)


# ------------------------- pure-JAX reference ---------------------------- #
def base_conv1x1_reference(x, p, *, bn=True, relu=True, eps=1e-5):
    dn = ("NCHW", "OIHW", "NCHW")
    h = lax.conv_general_dilated(x, p["w"][:, :, None, None], (1, 1), "VALID",
                                 dimension_numbers=dn,
                                 precision=lax.Precision.HIGHEST)
    if p.get("bias") is not None:
        h = h + p["bias"][None, :, None, None]
    if bn:
        h = ((h - p["bn_mean"][None, :, None, None])
             / jnp.sqrt(p["bn_var"] + eps)[None, :, None, None]
             * p["bn_gamma"][None, :, None, None]
             + p["bn_beta"][None, :, None, None])
    if relu:
        h = jnp.maximum(h, 0.0)
    return h


if __name__ == "__main__":
    Cin, Cout, H, W = 4, 8, 16, 16
    keys = jax.random.split(jax.random.PRNGKey(0), 8)

    params = {
        "w": 0.3 * jax.random.normal(keys[1], (Cout, Cin), jnp.float32),
        "bias": None,  # module default: bias=False
        "bn_gamma": 1.0 + 0.1 * jax.random.normal(keys[2], (Cout,), jnp.float32),
        "bn_beta": 0.1 * jax.random.normal(keys[3], (Cout,), jnp.float32),
        "bn_mean": 0.1 * jax.random.normal(keys[4], (Cout,), jnp.float32),
        "bn_var": 0.5 + jax.random.uniform(keys[5], (Cout,), jnp.float32),
    }

    # Small demo batch (single grid step), plus a multiple-of-8 batch that
    # exercises the full-sublane / multi-grid-point (megacore-friendly) path.
    for N in (2, 16):
        x = jax.random.normal(keys[0], (N, Cin, H, W), jnp.float32)
        out = jax.block_until_ready(base_conv1x1_forward(x, params))
        ref = jax.block_until_ready(base_conv1x1_reference(x, params))
        np.testing.assert_allclose(np.asarray(out), np.asarray(ref),
                                   rtol=1e-4, atol=1e-5)

    print("KERNEL_OK")
</pallas_src>

<mosaic_0001>
module attributes {stable_mosaic.version = 11 : i64} {
  func.func @_base_conv1x1_kernel(%arg0: i32, %arg1: memref<2x4x256xf32, #tpu.memory_space<vmem>>, %arg2: memref<8x4xf32, #tpu.memory_space<smem>>, %arg3: memref<8xf32, #tpu.memory_space<smem>>, %arg4: memref<2x8x256xf32, #tpu.memory_space<vmem>>) attributes {dimension_semantics = [#tpu.dimension_semantics<parallel>], iteration_bounds = array<i64: 1>, scalar_prefetch = 0 : i64, scratch_operands = 0 : i64, tpu.core_type = #tpu.core_type<tc>, window_params = [{transform_indices = @transform_0, window_bounds = array<i64: 2, 4, 256>}, {transform_indices = @transform_1, window_bounds = array<i64: 8, 4>}, {transform_indices = @transform_2, window_bounds = array<i64: 8>}, {transform_indices = @transform_3, window_bounds = array<i64: 2, 8, 256>}]} {
    %c0 = arith.constant 0 : index
    %c0_0 = arith.constant 0 : index
    %0 = memref.load %arg2[%c0, %c0_0] : memref<8x4xf32, #tpu.memory_space<smem>>
    %c0_1 = arith.constant 0 : index
    %c0_2 = arith.constant 0 : index
    %c0_3 = arith.constant 0 : index
    %1 = vector.load %arg1[%c0_1, %c0_2, %c0_3] : memref<2x4x256xf32, #tpu.memory_space<vmem>>, vector<2x1x256xf32>
    %2 = vector.shape_cast %1 : vector<2x1x256xf32> to vector<2x256xf32>
    %3 = vector.broadcast %0 : f32 to vector<2x256xf32>
    %4 = arith.mulf %3, %2 : vector<2x256xf32>
    %c0_4 = arith.constant 0 : index
    %c1 = arith.constant 1 : index
    %5 = memref.load %arg2[%c0_4, %c1] : memref<8x4xf32, #tpu.memory_space<smem>>
    %c0_5 = arith.constant 0 : index
    %c1_6 = arith.constant 1 : index
    %c0_7 = arith.constant 0 : index
    %6 = vector.load %arg1[%c0_5, %c1_6, %c0_7] : memref<2x4x256xf32, #tpu.memory_space<vmem>>, vector<2x1x256xf32>
    %7 = vector.shape_cast %6 : vector<2x1x256xf32> to vector<2x256xf32>
    %8 = vector.broadcast %5 : f32 to vector<2x256xf32>
    %9 = arith.mulf %8, %7 : vector<2x256xf32>
    %10 = arith.addf %4, %9 : vector<2x256xf32>
    %c0_8 = arith.constant 0 : index
    %c2 = arith.constant 2 : index
    %11 = memref.load %arg2[%c0_8, %c2] : memref<8x4xf32, #tpu.memory_space<smem>>
    %c0_9 = arith.constant 0 : index
    %c2_10 = arith.constant 2 : index
    %c0_11 = arith.constant 0 : index
    %12 = vector.load %arg1[%c0_9, %c2_10, %c0_11] : memref<2x4x256xf32, #tpu.memory_space<vmem>>, vector<2x1x256xf32>
    %13 = vector.shape_cast %12 : vector<2x1x256xf32> to vector<2x256xf32>
    %14 = vector.broadcast %11 : f32 to vector<2x256xf32>
    %15 = arith.mulf %14, %13 : vector<2x256xf32>
    %16 = arith.addf %10, %15 : vector<2x256xf32>
    %c0_12 = arith.constant 0 : index
    %c3 = arith.constant 3 : index
    %17 = memref.load %arg2[%c0_12, %c3] : memref<8x4xf32, #tpu.memory_space<smem>>
    %c0_13 = arith.constant 0 : index
    %c3_14 = arith.constant 3 : index
    %c0_15 = arith.constant 0 : index
    %18 = vector.load %arg1[%c0_13, %c3_14, %c0_15] : memref<2x4x256xf32, #tpu.memory_space<vmem>>, vector<2x1x256xf32>
    %19 = vector.shape_cast %18 : vector<2x1x256xf32> to vector<2x256xf32>
    %20 = vector.broadcast %17 : f32 to vector<2x256xf32>
    %21 = arith.mulf %20, %19 : vector<2x256xf32>
    %22 = arith.addf %16, %21 : vector<2x256xf32>
    %c0_16 = arith.constant 0 : index
    %23 = memref.load %arg3[%c0_16] : memref<8xf32, #tpu.memory_space<smem>>
    %24 = vector.broadcast %23 : f32 to vector<2x256xf32>
    %25 = arith.addf %22, %24 : vector<2x256xf32>
    %cst = arith.constant 0.000000e+00 : f32
    %26 = vector.broadcast %cst : f32 to vector<2x256xf32>
    %27 = arith.maximumf %25, %26 : vector<2x256xf32>
    %c0_17 = arith.constant 0 : index
    %c0_18 = arith.constant 0 : index
    %c0_19 = arith.constant 0 : index
    %28 = vector.load %arg4[%c0_17, %c0_18, %c0_19] : memref<2x8x256xf32, #tpu.memory_space<vmem>>, vector<2x1x256xf32>
    %29 = vector.shape_cast %28 : vector<2x1x256xf32> to vector<2x256xf32>
    %30 = vector.shape_cast %27 : vector<2x256xf32> to vector<2x1x256xf32>
    tpu.vector_store %arg4[%c0_17, %c0_18, %c0_19], %30 {strides = array<i32>} : memref<2x8x256xf32, #tpu.memory_space<vmem>>, vector<2x1x256xf32>,
    %c1_20 = arith.constant 1 : index
    %c0_21 = arith.constant 0 : index
    %31 = memref.load %arg2[%c1_20, %c0_21] : memref<8x4xf32, #tpu.memory_space<smem>>
    %c0_22 = arith.constant 0 : index
    %c0_23 = arith.constant 0 : index
    %c0_24 = arith.constant 0 : index
    %32 = vector.load %arg1[%c0_22, %c0_23, %c0_24] : memref<2x4x256xf32, #tpu.memory_space<vmem>>, vector<2x1x256xf32>
    %33 = vector.shape_cast %32 : vector<2x1x256xf32> to vector<2x256xf32>
    %34 = vector.broadcast %31 : f32 to vector<2x256xf32>
    %35 = arith.mulf %34, %33 : vector<2x256xf32>
    %c1_25 = arith.constant 1 : index
    %c1_26 = arith.constant 1 : index
    %36 = memref.load %arg2[%c1_25, %c1_26] : memref<8x4xf32, #tpu.memory_space<smem>>
    %c0_27 = arith.constant 0 : index
    %c1_28 = arith.constant 1 : index
    %c0_29 = arith.constant 0 : index
    %37 = vector.load %arg1[%c0_27, %c1_28, %c0_29] : memref<2x4x256xf32, #tpu.memory_space<vmem>>, vector<2x1x256xf32>
    %38 = vector.shape_cast %37 : vector<2x1x256xf32> to vector<2x256xf32>
    %39 = vector.broadcast %36 : f32 to vector<2x256xf32>
    %40 = arith.mulf %39, %38 : vector<2x256xf32>
    %41 = arith.addf %35, %40 : vector<2x256xf32>
    %c1_30 = arith.constant 1 : index
    %c2_31 = arith.constant 2 : index
    %42 = memref.load %arg2[%c1_30, %c2_31] : memref<8x4xf32, #tpu.memory_space<smem>>
    %c0_32 = arith.constant 0 : index
    %c2_33 = arith.constant 2 : index
    %c0_34 = arith.constant 0 : index
    %43 = vector.load %arg1[%c0_32, %c2_33, %c0_34] : memref<2x4x256xf32, #tpu.memory_space<vmem>>, vector<2x1x256xf32>
    %44 = vector.shape_cast %43 : vector<2x1x256xf32> to vector<2x256xf32>
    %45 = vector.broadcast %42 : f32 to vector<2x256xf32>
    %46 = arith.mulf %45, %44 : vector<2x256xf32>
    %47 = arith.addf %41, %46 : vector<2x256xf32>
    %c1_35 = arith.constant 1 : index
    %c3_36 = arith.constant 3 : index
    %48 = memref.load %arg2[%c1_35, %c3_36] : memref<8x4xf32, #tpu.memory_space<smem>>
    %c0_37 = arith.constant 0 : index
    %c3_38 = arith.constant 3 : index
    %c0_39 = arith.constant 0 : index
    %49 = vector.load %arg1[%c0_37, %c3_38, %c0_39] : memref<2x4x256xf32, #tpu.memory_space<vmem>>, vector<2x1x256xf32>
    %50 = vector.shape_cast %49 : vector<2x1x256xf32> to vector<2x256xf32>
    %51 = vector.broadcast %48 : f32 to vector<2x256xf32>
    %52 = arith.mulf %51, %50 : vector<2x256xf32>
    %53 = arith.addf %47, %52 : vector<2x256xf32>
    %c1_40 = arith.constant 1 : index
    %54 = memref.load %arg3[%c1_40] : memref<8xf32, #tpu.memory_space<smem>>
    %55 = vector.broadcast %54 : f32 to vector<2x256xf32>
    %56 = arith.addf %53, %55 : vector<2x256xf32>
    %cst_41 = arith.constant 0.000000e+00 : f32
    %57 = vector.broadcast %cst_41 : f32 to vector<2x256xf32>
    %58 = arith.maximumf %56, %57 : vector<2x256xf32>
    %c0_42 = arith.constant 0 : index
    %c1_43 = arith.constant 1 : index
    %c0_44 = arith.constant 0 : index
    %59 = vector.load %arg4[%c0_42, %c1_43, %c0_44] : memref<2x8x256xf32, #tpu.memory_space<vmem>>, vector<2x1x256xf32>
    %60 = vector.shape_cast %59 : vector<2x1x256xf32> to vector<2x256xf32>
    %61 = vector.shape_cast %58 : vector<2x256xf32> to vector<2x1x256xf32>
    tpu.vector_store %arg4[%c0_42, %c1_43, %c0_44], %61 {strides = array<i32>} : memref<2x8x256xf32, #tpu.memory_space<vmem>>, vector<2x1x256xf32>,
    %c2_45 = arith.constant 2 : index
    %c0_46 = arith.constant 0 : index
    %62 = memref.load %arg2[%c2_45, %c0_46] : memref<8x4xf32, #tpu.memory_space<smem>>
    %c0_47 = arith.constant 0 : index
    %c0_48 = arith.constant 0 : index
    %c0_49 = arith.constant 0 : index
    %63 = vector.load %arg1[%c0_47, %c0_48, %c0_49] : memref<2x4x256xf32, #tpu.memory_space<vmem>>, vector<2x1x256xf32>
    %64 = vector.shape_cast %63 : vector<2x1x256xf32> to vector<2x256xf32>
    %65 = vector.broadcast %62 : f32 to vector<2x256xf32>
    %66 = arith.mulf %65, %64 : vector<2x256xf32>
    %c2_50 = arith.constant 2 : index
    %c1_51 = arith.constant 1 : index
    %67 = memref.load %arg2[%c2_50, %c1_51] : memref<8x4xf32, #tpu.memory_space<smem>>
    %c0_52 = arith.constant 0 : index
    %c1_53 = arith.constant 1 : index
    %c0_54 = arith.constant 0 : index
    %68 = vector.load %arg1[%c0_52, %c1_53, %c0_54] : memref<2x4x256xf32, #tpu.memory_space<vmem>>, vector<2x1x256xf32>
    %69 = vector.shape_cast %68 : vector<2x1x256xf32> to vector<2x256xf32>
    %70 = vector.broadcast %67 : f32 to vector<2x256xf32>
    %71 = arith.mulf %70, %69 : vector<2x256xf32>
    %72 = arith.addf %66, %71 : vector<2x256xf32>
    %c2_55 = arith.constant 2 : index
    %c2_56 = arith.constant 2 : index
    %73 = memref.load %arg2[%c2_55, %c2_56] : memref<8x4xf32, #tpu.memory_space<smem>>
    %c0_57 = arith.constant 0 : index
    %c2_58 = arith.constant 2 : index
    %c0_59 = arith.constant 0 : index
    %74 = vector.load %arg1[%c0_57, %c2_58, %c0_59] : memref<2x4x256xf32, #tpu.memory_space<vmem>>, vector<2x1x256xf32>
    %75 = vector.shape_cast %74 : vector<2x1x256xf32> to vector<2x256xf32>
    %76 = vector.broadcast %73 : f32 to vector<2x256xf32>
    %77 = arith.mulf %76, %75 : vector<2x256xf32>
    %78 = arith.addf %72, %77 : vector<2x256xf32>
    %c2_60 = arith.constant 2 : index
    %c3_61 = arith.constant 3 : index
    %79 = memref.load %arg2[%c2_60, %c3_61] : memref<8x4xf32, #tpu.memory_space<smem>>
    %c0_62 = arith.constant 0 : index
    %c3_63 = arith.constant 3 : index
    %c0_64 = arith.constant 0 : index
    %80 = vector.load %arg1[%c0_62, %c3_63, %c0_64] : memref<2x4x256xf32, #tpu.memory_space<vmem>>, vector<2x1x256xf32>
    %81 = vector.shape_cast %80 : vector<2x1x256xf32> to vector<2x256xf32>
    %82 = vector.broadcast %79 : f32 to vector<2x256xf32>
    %83 = arith.mulf %82, %81 : vector<2x256xf32>
    %84 = arith.addf %78, %83 : vector<2x256xf32>
    %c2_65 = arith.constant 2 : index
    %85 = memref.load %arg3[%c2_65] : memref<8xf32, #tpu.memory_space<smem>>
    %86 = vector.broadcast %85 : f32 to vector<2x256xf32>
    %87 = arith.addf %84, %86 : vector<2x256xf32>
    %cst_66 = arith.constant 0.000000e+00 : f32
    %88 = vector.broadcast %cst_66 : f32 to vector<2x256xf32>
    %89 = arith.maximumf %87, %88 : vector<2x256xf32>
    %c0_67 = arith.constant 0 : index
    %c2_68 = arith.constant 2 : index
    %c0_69 = arith.constant 0 : index
    %90 = vector.load %arg4[%c0_67, %c2_68, %c0_69] : memref<2x8x256xf32, #tpu.memory_space<vmem>>, vector<2x1x256xf32>
    %91 = vector.shape_cast %90 : vector<2x1x256xf32> to vector<2x256xf32>
    %92 = vector.shape_cast %89 : vector<2x256xf32> to vector<2x1x256xf32>
    tpu.vector_store %arg4[%c0_67, %c2_68, %c0_69], %92 {strides = array<i32>} : memref<2x8x256xf32, #tpu.memory_space<vmem>>, vector<2x1x256xf32>,
    %c3_70 = arith.constant 3 : index
    %c0_71 = arith.constant 0 : index
    %93 = memref.load %arg2[%c3_70, %c0_71] : memref<8x4xf32, #tpu.memory_space<smem>>
    %c0_72 = arith.constant 0 : index
    %c0_73 = arith.constant 0 : index
    %c0_74 = arith.constant 0 : index
    %94 = vector.load %arg1[%c0_72, %c0_73, %c0_74] : memref<2x4x256xf32, #tpu.memory_space<vmem>>, vector<2x1x256xf32>
    %95 = vector.shape_cast %94 : vector<2x1x256xf32> to vector<2x256xf32>
    %96 = vector.broadcast %93 : f32 to vector<2x256xf32>
    %97 = arith.mulf %96, %95 : vector<2x256xf32>
    %c3_75 = arith.constant 3 : index
    %c1_76 = arith.constant 1 : index
    %98 = memref.load %arg2[%c3_75, %c1_76] : memref<8x4xf32, #tpu.memory_space<smem>>
    %c0_77 = arith.constant 0 : index
    %c1_78 = arith.constant 1 : index
    %c0_79 = arith.constant 0 : index
    %99 = vector.load %arg1[%c0_77, %c1_78, %c0_79] : memref<2x4x256xf32, #tpu.memory_space<vmem>>, vector<2x1x256xf32>
    %100 = vector.shape_cast %99 : vector<2x1x256xf32> to vector<2x256xf32>
    %101 = vector.broadcast %98 : f32 to vector<2x256xf32>
    %102 = arith.mulf %101, %100 : vector<2x256xf32>
    %103 = arith.addf %97, %102 : vector<2x256xf32>
    %c3_80 = arith.constant 3 : index
    %c2_81 = arith.constant 2 : index
    %104 = memref.load %arg2[%c3_80, %c2_81] : memref<8x4xf32, #tpu.memory_space<smem>>
    %c0_82 = arith.constant 0 : index
    %c2_83 = arith.constant 2 : index
    %c0_84 = arith.constant 0 : index
    %105 = vector.load %arg1[%c0_82, %c2_83, %c0_84] : memref<2x4x256xf32, #tpu.memory_space<vmem>>, vector<2x1x256xf32>
    %106 = vector.shape_cast %105 : vector<2x1x256xf32> to vector<2x256xf32>
    %107 = vector.broadcast %104 : f32 to vector<2x256xf32>
    %108 = arith.mulf %107, %106 : vector<2x256xf32>
    %109 = arith.addf %103, %108 : vector<2x256xf32>
    %c3_85 = arith.constant 3 : index
    %c3_86 = arith.constant 3 : index
    %110 = memref.load %arg2[%c3_85, %c3_86] : memref<8x4xf32, #tpu.memory_space<smem>>
    %c0_87 = arith.constant 0 : index
    %c3_88 = arith.constant 3 : index
    %c0_89 = arith.constant 0 : index
    %111 = vector.load %arg1[%c0_87, %c3_88, %c0_89] : memref<2x4x256xf32, #tpu.memory_space<vmem>>, vector<2x1x256xf32>
    %112 = vector.shape_cast %111 : vector<2x1x256xf32> to vector<2x256xf32>
    %113 = vector.broadcast %110 : f32 to vector<2x256xf32>
    %114 = arith.mulf %113, %112 : vector<2x256xf32>
    %115 = arith.addf %109, %114 : vector<2x256xf32>
    %c3_90 = arith.constant 3 : index
    %116 = memref.load %arg3[%c3_90] : memref<8xf32, #tpu.memory_space<smem>>
    %117 = vector.broadcast %116 : f32 to vector<2x256xf32>
    %118 = arith.addf %115, %117 : vector<2x256xf32>
    %cst_91 = arith.constant 0.000000e+00 : f32
    %119 = vector.broadcast %cst_91 : f32 to vector<2x256xf32>
    %120 = arith.maximumf %118, %119 : vector<2x256xf32>
    %c0_92 = arith.constant 0 : index
    %c3_93 = arith.constant 3 : index
    %c0_94 = arith.constant 0 : index
    %121 = vector.load %arg4[%c0_92, %c3_93, %c0_94] : memref<2x8x256xf32, #tpu.memory_space<vmem>>, vector<2x1x256xf32>
    %122 = vector.shape_cast %121 : vector<2x1x256xf32> to vector<2x256xf32>
    %123 = vector.shape_cast %120 : vector<2x256xf32> to vector<2x1x256xf32>
    tpu.vector_store %arg4[%c0_92, %c3_93, %c0_94], %123 {strides = array<i32>} : memref<2x8x256xf32, #tpu.memory_space<vmem>>, vector<2x1x256xf32>,
    %c4 = arith.constant 4 : index
    %c0_95 = arith.constant 0 : index
    %124 = memref.load %arg2[%c4, %c0_95] : memref<8x4xf32, #tpu.memory_space<smem>>
    %c0_96 = arith.constant 0 : index
    %c0_97 = arith.constant 0 : index
    %c0_98 = arith.constant 0 : index
    %125 = vector.load %arg1[%c0_96, %c0_97, %c0_98] : memref<2x4x256xf32, #tpu.memory_space<vmem>>, vector<2x1x256xf32>
    %126 = vector.shape_cast %125 : vector<2x1x256xf32> to vector<2x256xf32>
    %127 = vector.broadcast %124 : f32 to vector<2x256xf32>
    %128 = arith.mulf %127, %126 : vector<2x256xf32>
    %c4_99 = arith.constant 4 : index
    %c1_100 = arith.constant 1 : index
    %129 = memref.load %arg2[%c4_99, %c1_100] : memref<8x4xf32, #tpu.memory_space<smem>>
    %c0_101 = arith.constant 0 : index
    %c1_102 = arith.constant 1 : index
    %c0_103 = arith.constant 0 : index
    %130 = vector.load %arg1[%c0_101, %c1_102, %c0_103] : memref<2x4x256xf32, #tpu.memory_space<vmem>>, vector<2x1x256xf32>
    %131 = vector.shape_cast %130 : vector<2x1x256xf32> to vector<2x256xf32>
    %132 = vector.broadcast %129 : f32 to vector<2x256xf32>
    %133 = arith.mulf %132, %131 : vector<2x256xf32>
    %134 = arith.addf %128, %133 : vector<2x256xf32>
    %c4_104 = arith.constant 4 : index
    %c2_105 = arith.constant 2 : index
    %135 = memref.load %arg2[%c4_104, %c2_105] : memref<8x4xf32, #tpu.memory_space<smem>>
    %c0_106 = arith.constant 0 : index
    %c2_107 = arith.constant 2 : index
    %c0_108 = arith.constant 0 : index
    %136 = vector.load %arg1[%c0_106, %c2_107, %c0_108] : memref<2x4x256xf32, #tpu.memory_space<vmem>>, vector<2x1x256xf32>
    %137 = vector.shape_cast %136 : vector<2x1x256xf32> to vector<2x256xf32>
    %138 = vector.broadcast %135 : f32 to vector<2x256xf32>
    %139 = arith.mulf %138, %137 : vector<2x256xf32>
    %140 = arith.addf %134, %139 : vector<2x256xf32>
    %c4_109 = arith.constant 4 : index
    %c3_110 = arith.constant 3 : index
    %141 = memref.load %arg2[%c4_109, %c3_110] : memref<8x4xf32, #tpu.memory_space<smem>>
    %c0_111 = arith.constant 0 : index
    %c3_112 = arith.constant 3 : index
    %c0_113 = arith.constant 0 : index
    %142 = vector.load %arg1[%c0_111, %c3_112, %c0_113] : memref<2x4x256xf32, #tpu.memory_space<vmem>>, vector<2x1x256xf32>
    %143 = vector.shape_cast %142 : vector<2x1x256xf32> to vector<2x256xf32>
    %144 = vector.broadcast %141 : f32 to vector<2x256xf32>
    %145 = arith.mulf %144, %143 : vector<2x256xf32>
    %146 = arith.addf %140, %145 : vector<2x256xf32>
    %c4_114 = arith.constant 4 : index
    %147 = memref.load %arg3[%c4_114] : memref<8xf32, #tpu.memory_space<smem>>
    %148 = vector.broadcast %147 : f32 to vector<2x256xf32>
    %149 = arith.addf %146, %148 : vector<2x256xf32>
    %cst_115 = arith.constant 0.000000e+00 : f32
    %150 = vector.broadcast %cst_115 : f32 to vector<2x256xf32>
    %151 = arith.maximumf %149, %150 : vector<2x256xf32>
    %c0_116 = arith.constant 0 : index
    %c4_117 = arith.constant 4 : index
    %c0_118 = arith.constant 0 : index
    %152 = vector.load %arg4[%c0_116, %c4_117, %c0_118] : memref<2x8x256xf32, #tpu.memory_space<vmem>>, vector<2x1x256xf32>
    %153 = vector.shape_cast %152 : vector<2x1x256xf32> to vector<2x256xf32>
    %154 = vector.shape_cast %151 : vector<2x256xf32> to vector<2x1x256xf32>
    tpu.vector_store %arg4[%c0_116, %c4_117, %c0_118], %154 {strides = array<i32>} : memref<2x8x256xf32, #tpu.memory_space<vmem>>, vector<2x1x256xf32>,
    %c5 = arith.constant 5 : index
    %c0_119 = arith.constant 0 : index
    %155 = memref.load %arg2[%c5, %c0_119] : memref<8x4xf32, #tpu.memory_space<smem>>
    %c0_120 = arith.constant 0 : index
    %c0_121 = arith.constant 0 : index
    %c0_122 = arith.constant 0 : index
    %156 = vector.load %arg1[%c0_120, %c0_121, %c0_122] : memref<2x4x256xf32, #tpu.memory_space<vmem>>, vector<2x1x256xf32>
    %157 = vector.shape_cast %156 : vector<2x1x256xf32> to vector<2x256xf32>
    %158 = vector.broadcast %155 : f32 to vector<2x256xf32>
    %159 = arith.mulf %158, %157 : vector<2x256xf32>
    %c5_123 = arith.constant 5 : index
    %c1_124 = arith.constant 1 : index
    %160 = memref.load %arg2[%c5_123, %c1_124] : memref<8x4xf32, #tpu.memory_space<smem>>
    %c0_125 = arith.constant 0 : index
    %c1_126 = arith.constant 1 : index
    %c0_127 = arith.constant 0 : index
    %161 = vector.load %arg1[%c0_125, %c1_126, %c0_127] : memref<2x4x256xf32, #tpu.memory_space<vmem>>, vector<2x1x256xf32>
    %162 = vector.shape_cast %161 : vector<2x1x256xf32> to vector<2x256xf32>
    %163 = vector.broadcast %160 : f32 to vector<2x256xf32>
    %164 = arith.mulf %163, %162 : vector<2x256xf32>
    %165 = arith.addf %159, %164 : vector<2x256xf32>
    %c5_128 = arith.constant 5 : index
    %c2_129 = arith.constant 2 : index
    %166 = memref.load %arg2[%c5_128, %c2_129] : memref<8x4xf32, #tpu.memory_space<smem>>
    %c0_130 = arith.constant 0 : index
    %c2_131 = arith.constant 2 : index
    %c0_132 = arith.constant 0 : index
    %167 = vector.load %arg1[%c0_130, %c2_131, %c0_132] : memref<2x4x256xf32, #tpu.memory_space<vmem>>, vector<2x1x256xf32>
    %168 = vector.shape_cast %167 : vector<2x1x256xf32> to vector<2x256xf32>
    %169 = vector.broadcast %166 : f32 to vector<2x256xf32>
    %170 = arith.mulf %169, %168 : vector<2x256xf32>
    %171 = arith.addf %165, %170 : vector<2x256xf32>
    %c5_133 = arith.constant 5 : index
    %c3_134 = arith.constant 3 : index
    %172 = memref.load %arg2[%c5_133, %c3_134] : memref<8x4xf32, #tpu.memory_space<smem>>
    %c0_135 = arith.constant 0 : index
    %c3_136 = arith.constant 3 : index
    %c0_137 = arith.constant 0 : index
    %173 = vector.load %arg1[%c0_135, %c3_136, %c0_137] : memref<2x4x256xf32, #tpu.memory_space<vmem>>, vector<2x1x256xf32>
    %174 = vector.shape_cast %173 : vector<2x1x256xf32> to vector<2x256xf32>
    %175 = vector.broadcast %172 : f32 to vector<2x256xf32>
    %176 = arith.mulf %175, %174 : vector<2x256xf32>
    %177 = arith.addf %171, %176 : vector<2x256xf32>
    %c5_138 = arith.constant 5 : index
    %178 = memref.load %arg3[%c5_138] : memref<8xf32, #tpu.memory_space<smem>>
    %179 = vector.broadcast %178 : f32 to vector<2x256xf32>
    %180 = arith.addf %177, %179 : vector<2x256xf32>
    %cst_139 = arith.constant 0.000000e+00 : f32
    %181 = vector.broadcast %cst_139 : f32 to vector<2x256xf32>
    %182 = arith.maximumf %180, %181 : vector<2x256xf32>
    %c0_140 = arith.constant 0 : index
    %c5_141 = arith.constant 5 : index
    %c0_142 = arith.constant 0 : index
    %183 = vector.load %arg4[%c0_140, %c5_141, %c0_142] : memref<2x8x256xf32, #tpu.memory_space<vmem>>, vector<2x1x256xf32>
    %184 = vector.shape_cast %183 : vector<2x1x256xf32> to vector<2x256xf32>
    %185 = vector.shape_cast %182 : vector<2x256xf32> to vector<2x1x256xf32>
    tpu.vector_store %arg4[%c0_140, %c5_141, %c0_142], %185 {strides = array<i32>} : memref<2x8x256xf32, #tpu.memory_space<vmem>>, vector<2x1x256xf32>,
    %c6 = arith.constant 6 : index
    %c0_143 = arith.constant 0 : index
    %186 = memref.load %arg2[%c6, %c0_143] : memref<8x4xf32, #tpu.memory_space<smem>>
    %c0_144 = arith.constant 0 : index
    %c0_145 = arith.constant 0 : index
    %c0_146 = arith.constant 0 : index
    %187 = vector.load %arg1[%c0_144, %c0_145, %c0_146] : memref<2x4x256xf32, #tpu.memory_space<vmem>>, vector<2x1x256xf32>
    %188 = vector.shape_cast %187 : vector<2x1x256xf32> to vector<2x256xf32>
    %189 = vector.broadcast %186 : f32 to vector<2x256xf32>
    %190 = arith.mulf %189, %188 : vector<2x256xf32>
    %c6_147 = arith.constant 6 : index
    %c1_148 = arith.constant 1 : index
    %191 = memref.load %arg2[%c6_147, %c1_148] : memref<8x4xf32, #tpu.memory_space<smem>>
    %c0_149 = arith.constant 0 : index
    %c1_150 = arith.constant 1 : index
    %c0_151 = arith.constant 0 : index
    %192 = vector.load %arg1[%c0_149, %c1_150, %c0_151] : memref<2x4x256xf32, #tpu.memory_space<vmem>>, vector<2x1x256xf32>
    %193 = vector.shape_cast %192 : vector<2x1x256xf32> to vector<2x256xf32>
    %194 = vector.broadcast %191 : f32 to vector<2x256xf32>
    %195 = arith.mulf %194, %193 : vector<2x256xf32>
    %196 = arith.addf %190, %195 : vector<2x256xf32>
    %c6_152 = arith.constant 6 : index
    %c2_153 = arith.constant 2 : index
    %197 = memref.load %arg2[%c6_152, %c2_153] : memref<8x4xf32, #tpu.memory_space<smem>>
    %c0_154 = arith.constant 0 : index
    %c2_155 = arith.constant 2 : index
    %c0_156 = arith.constant 0 : index
    %198 = vector.load %arg1[%c0_154, %c2_155, %c0_156] : memref<2x4x256xf32, #tpu.memory_space<vmem>>, vector<2x1x256xf32>
    %199 = vector.shape_cast %198 : vector<2x1x256xf32> to vector<2x256xf32>
    %200 = vector.broadcast %197 : f32 to vector<2x256xf32>
    %201 = arith.mulf %200, %199 : vector<2x256xf32>
    %202 = arith.addf %196, %201 : vector<2x256xf32>
    %c6_157 = arith.constant 6 : index
    %c3_158 = arith.constant 3 : index
    %203 = memref.load %arg2[%c6_157, %c3_158] : memref<8x4xf32, #tpu.memory_space<smem>>
    %c0_159 = arith.constant 0 : index
    %c3_160 = arith.constant 3 : index
    %c0_161 = arith.constant 0 : index
    %204 = vector.load %arg1[%c0_159, %c3_160, %c0_161] : memref<2x4x256xf32, #tpu.memory_space<vmem>>, vector<2x1x256xf32>
    %205 = vector.shape_cast %204 : vector<2x1x256xf32> to vector<2x256xf32>
    %206 = vector.broadcast %203 : f32 to vector<2x256xf32>
    %207 = arith.mulf %206, %205 : vector<2x256xf32>
    %208 = arith.addf %202, %207 : vector<2x256xf32>
    %c6_162 = arith.constant 6 : index
    %209 = memref.load %arg3[%c6_162] : memref<8xf32, #tpu.memory_space<smem>>
    %210 = vector.broadcast %209 : f32 to vector<2x256xf32>
    %211 = arith.addf %208, %210 : vector<2x256xf32>
    %cst_163 = arith.constant 0.000000e+00 : f32
    %212 = vector.broadcast %cst_163 : f32 to vector<2x256xf32>
    %213 = arith.maximumf %211, %212 : vector<2x256xf32>
    %c0_164 = arith.constant 0 : index
    %c6_165 = arith.constant 6 : index
    %c0_166 = arith.constant 0 : index
    %214 = vector.load %arg4[%c0_164, %c6_165, %c0_166] : memref<2x8x256xf32, #tpu.memory_space<vmem>>, vector<2x1x256xf32>
    %215 = vector.shape_cast %214 : vector<2x1x256xf32> to vector<2x256xf32>
    %216 = vector.shape_cast %213 : vector<2x256xf32> to vector<2x1x256xf32>
    tpu.vector_store %arg4[%c0_164, %c6_165, %c0_166], %216 {strides = array<i32>} : memref<2x8x256xf32, #tpu.memory_space<vmem>>, vector<2x1x256xf32>,
    %c7 = arith.constant 7 : index
    %c0_167 = arith.constant 0 : index
    %217 = memref.load %arg2[%c7, %c0_167] : memref<8x4xf32, #tpu.memory_space<smem>>
    %c0_168 = arith.constant 0 : index
    %c0_169 = arith.constant 0 : index
    %c0_170 = arith.constant 0 : index
    %218 = vector.load %arg1[%c0_168, %c0_169, %c0_170] : memref<2x4x256xf32, #tpu.memory_space<vmem>>, vector<2x1x256xf32>
    %219 = vector.shape_cast %218 : vector<2x1x256xf32> to vector<2x256xf32>
    %220 = vector.broadcast %217 : f32 to vector<2x256xf32>
    %221 = arith.mulf %220, %219 : vector<2x256xf32>
    %c7_171 = arith.constant 7 : index
    %c1_172 = arith.constant 1 : index
    %222 = memref.load %arg2[%c7_171, %c1_172] : memref<8x4xf32, #tpu.memory_space<smem>>
    %c0_173 = arith.constant 0 : index
    %c1_174 = arith.constant 1 : index
    %c0_175 = arith.constant 0 : index
    %223 = vector.load %arg1[%c0_173, %c1_174, %c0_175] : memref<2x4x256xf32, #tpu.memory_space<vmem>>, vector<2x1x256xf32>
    %224 = vector.shape_cast %223 : vector<2x1x256xf32> to vector<2x256xf32>
    %225 = vector.broadcast %222 : f32 to vector<2x256xf32>
    %226 = arith.mulf %225, %224 : vector<2x256xf32>
    %227 = arith.addf %221, %226 : vector<2x256xf32>
    %c7_176 = arith.constant 7 : index
    %c2_177 = arith.constant 2 : index
    %228 = memref.load %arg2[%c7_176, %c2_177] : memref<8x4xf32, #tpu.memory_space<smem>>
    %c0_178 = arith.constant 0 : index
    %c2_179 = arith.constant 2 : index
    %c0_180 = arith.constant 0 : index
    %229 = vector.load %arg1[%c0_178, %c2_179, %c0_180] : memref<2x4x256xf32, #tpu.memory_space<vmem>>, vector<2x1x256xf32>
    %230 = vector.shape_cast %229 : vector<2x1x256xf32> to vector<2x256xf32>
    %231 = vector.broadcast %228 : f32 to vector<2x256xf32>
    %232 = arith.mulf %231, %230 : vector<2x256xf32>
    %233 = arith.addf %227, %232 : vector<2x256xf32>
    %c7_181 = arith.constant 7 : index
    %c3_182 = arith.constant 3 : index
    %234 = memref.load %arg2[%c7_181, %c3_182] : memref<8x4xf32, #tpu.memory_space<smem>>
    %c0_183 = arith.constant 0 : index
    %c3_184 = arith.constant 3 : index
    %c0_185 = arith.constant 0 : index
    %235 = vector.load %arg1[%c0_183, %c3_184, %c0_185] : memref<2x4x256xf32, #tpu.memory_space<vmem>>, vector<2x1x256xf32>
    %236 = vector.shape_cast %235 : vector<2x1x256xf32> to vector<2x256xf32>
    %237 = vector.broadcast %234 : f32 to vector<2x256xf32>
    %238 = arith.mulf %237, %236 : vector<2x256xf32>
    %239 = arith.addf %233, %238 : vector<2x256xf32>
    %c7_186 = arith.constant 7 : index
    %240 = memref.load %arg3[%c7_186] : memref<8xf32, #tpu.memory_space<smem>>
    %241 = vector.broadcast %240 : f32 to vector<2x256xf32>
    %242 = arith.addf %239, %241 : vector<2x256xf32>
    %cst_187 = arith.constant 0.000000e+00 : f32
    %243 = vector.broadcast %cst_187 : f32 to vector<2x256xf32>
    %244 = arith.maximumf %242, %243 : vector<2x256xf32>
    %c0_188 = arith.constant 0 : index
    %c7_189 = arith.constant 7 : index
    %c0_190 = arith.constant 0 : index
    %245 = vector.load %arg4[%c0_188, %c7_189, %c0_190] : memref<2x8x256xf32, #tpu.memory_space<vmem>>, vector<2x1x256xf32>
    %246 = vector.shape_cast %245 : vector<2x1x256xf32> to vector<2x256xf32>
    %247 = vector.shape_cast %244 : vector<2x256xf32> to vector<2x1x256xf32>
    tpu.vector_store %arg4[%c0_188, %c7_189, %c0_190], %247 {strides = array<i32>} : memref<2x8x256xf32, #tpu.memory_space<vmem>>, vector<2x1x256xf32>,
    return
  }
  func.func @transform_0(%arg0: i32) -> (i32, i32, i32) {
    %c0_i32 = arith.constant 0 : i32
    %c0_i32_0 = arith.constant 0 : i32
    %c0_i32_1 = arith.constant 0 : i32
    return %arg0, %c0_i32, %c0_i32_0 : i32, i32, i32
  }
  func.func @transform_1(%arg0: i32) -> (i32, i32) {
    %c0_i32 = arith.constant 0 : i32
    %c0_i32_0 = arith.constant 0 : i32
    %c0_i32_1 = arith.constant 0 : i32
    return %c0_i32, %c0_i32_0 : i32, i32
  }
  func.func @transform_2(%arg0: i32) -> i32 {
    %c0_i32 = arith.constant 0 : i32
    %c0_i32_0 = arith.constant 0 : i32
    return %c0_i32 : i32
  }
  func.func @transform_3(%arg0: i32) -> (i32, i32, i32) {
    %c0_i32 = arith.constant 0 : i32
    %c0_i32_0 = arith.constant 0 : i32
    %c0_i32_1 = arith.constant 0 : i32
    return %arg0, %c0_i32, %c0_i32_0 : i32, i32, i32
  }
}

</mosaic_0001>

<llo_original>
// kernel: tpu_custom_call.1
$region0: #{tpu_custom_call.1}
  #allocation0 [shape = 'u32[]', space=smem, size = 0x4, offset = 0x4, fixed_abs, tag = 'smem constant byte address 0x4 - core index']
  #allocation1 [shape = 'u32[144,128]{1,0:T(1,128)}', space=vmem, size = 0x12000, scoped, tag = 'internal scratch']
  %s0 = inlined_call_operand.hbm [shape: f32[2,4,256], index: 0, kind: input, shape index: {}]
  %s1 = inlined_call_operand.vmem [shape: f32[8,4], index: 1, kind: input, shape index: {}]
  %s2 = inlined_call_operand.vmem [shape: f32[8], index: 2, kind: input, shape index: {}]
  %s3 = inlined_call_operand.hbm [shape: f32[2,8,256], index: 3, kind: output, shape index: {}]
  %s4 = sld [smem:[#allocation0]]
  $region34: #{tpu_custom_call.1} parent=0
    _
  %s6 = ssub.s32 1, %s4
  %s7 = scalar_select 0, %s6, %s4
  $region1: #{tpu_custom_call.1} parent=0
    #allocation2 [shape = 'u8[8192]{0}', space=vmem, size = 0x2000, scoped, tag = 'input window, operand 0, single buffered']
    #allocation3 [shape = 's32[1]{0}', space=sflag, size = 0x4, scoped, tag = 'scoped memory for tpu_custom_call.1']
    #allocation4 [shape = 's32[1]{0}', space=sflag, size = 0x4, scoped, tag = 'scoped memory for tpu_custom_call.1']
    #allocation5 [shape = 's32[1]{0}', space=sflag, size = 0x4, scoped, tag = 'scoped memory for tpu_custom_call.1']
    #allocation6 [shape = 'u8[4096]{0}', space=smem, size = 0x1000, scoped, tag = 'input window, operand 1, single buffered']
    #allocation7 [shape = 'u8[512]{0}', space=smem, size = 0x200, scoped, tag = 'input window, operand 2, single buffered']
    #allocation8 [shape = 's32[1]{0}', space=sflag, size = 0x4, scoped, tag = 'scoped memory for tpu_custom_call.1']
    #allocation9 [shape = 'u8[16384]{0}', space=vmem, size = 0x4000, scoped, tag = 'output window, operand 0, single buffered']
    %8 = vsyncpa [#allocation3], 0
    %9 = vsyncpa [#allocation5], 0
    %10 = vsyncpa [#allocation8], 0
    %11 = vsyncpa [#allocation4], 0
    // Predicated region
    $region2: #{tpu_custom_call.1} parent=1 // pred_check
      _
    $region3: #{tpu_custom_call.1} parent=1 // pred_check_branch
      %13 = sbr.rel (0) target = $region5
    $region4: #{tpu_custom_call.1} parent=1 // pred_region
      %s15 = ssub.s32 256, 256
      %16 = vsyncadd [#allocation3], %s15
      %s17 = sshll.u32 [#allocation2], 4
      %s18 = int_to_ptr.vmem [resolvable:$true] %s17
      %23 = dma.hbm_to_vmem [thread:$0]  %s0, 256, %s18, [#allocation3], 128, 128, 8
    $region5: #{tpu_custom_call.1} parent=1 // pred_fallthru
      _
    // Predicated region
    $region6: #{tpu_custom_call.1} parent=1 // pred_check
      _
    $region7: #{tpu_custom_call.1} parent=1 // pred_check_branch
      %25 = sbr.rel (0) target = $region9
    $region8: #{tpu_custom_call.1} parent=1 // pred_region
      %s27 = ssub.s32 128, 128
      %28 = vsyncadd [#allocation5], %s27
      %s30 = sshll.u32 %s1, 4
      %s31 = int_to_ptr.vmem [resolvable:$true] %s30
      %33 = dma.vmem_to_smem %s31, 128, [#allocation6], [#allocation5]
    $region9: #{tpu_custom_call.1} parent=1 // pred_fallthru
      _
    // Predicated region
    $region10: #{tpu_custom_call.1} parent=1 // pred_check
      _
    $region11: #{tpu_custom_call.1} parent=1 // pred_check_branch
      %35 = sbr.rel (0) target = $region13
    $region12: #{tpu_custom_call.1} parent=1 // pred_region
      %s37 = ssub.s32 16, 16
      %38 = vsyncadd [#allocation8], %s37
      %s40 = sshll.u32 %s2, 4
      %s41 = int_to_ptr.vmem [resolvable:$true] %s40
      %43 = dma.vmem_to_smem %s41, 16, [#allocation7], [#allocation8]
    $region13: #{tpu_custom_call.1} parent=1 // pred_fallthru
      _
    // Predicated region
    $region14: #{tpu_custom_call.1} parent=1 // pred_check
      _
    $region15: #{tpu_custom_call.1} parent=1 // pred_check_branch
      %45 = sbr.rel (0) target = $region17
    $region16: #{tpu_custom_call.1} parent=1 // pred_region
      %46 = dma.done [#allocation3], 256
    $region17: #{tpu_custom_call.1} parent=1 // pred_fallthru
      _
    // Predicated region
    $region18: #{tpu_custom_call.1} parent=1 // pred_check
      _
    $region19: #{tpu_custom_call.1} parent=1 // pred_check_branch
      %48 = sbr.rel (0) target = $region21
    $region20: #{tpu_custom_call.1} parent=1 // pred_region
      %49 = dma.done [#allocation5], 128
    $region21: #{tpu_custom_call.1} parent=1 // pred_fallthru
      _
    // Predicated region
    $region22: #{tpu_custom_call.1} parent=1 // pred_check
      _
    $region23: #{tpu_custom_call.1} parent=1 // pred_check_branch
      %51 = sbr.rel (0) target = $region25
    $region24: #{tpu_custom_call.1} parent=1 // pred_region
      %52 = dma.done [#allocation8], 16
    $region25: #{tpu_custom_call.1} parent=1 // pred_fallthru
      _
    %53 = sfence
    %s54 = sld [smem:[#allocation6]]
    %v55 = vld [vmem:[#allocation2] ss:$4 sm:$0x3]
    %s56 = scalar_lea.vmem [#allocation2], 8
    %v57 = vld [vmem:[%s56] ss:$4 sm:$0x3]
    %v58 = vstv %s54
    %v59 = vmul.f32 %v58, %v55
    %v60 = vmul.f32 %v58, %v57
    %s61 = sld [smem:[#allocation6 + $0x1]]
    %s62 = scalar_lea.vmem [#allocation2], 1
    %v63 = vld [vmem:[%s62] ss:$4 sm:$0x3]
    %s64 = scalar_lea.vmem [#allocation2], 9
    %v65 = vld [vmem:[%s64] ss:$4 sm:$0x3]
    %v66 = vstv %s61
    %v67 = vmul.f32 %v66, %v63
    %v68 = vmul.f32 %v66, %v65
    %v69 = vadd.f32 %v59, %v67
    %v70 = vadd.f32 %v60, %v68
    %s71 = sld [smem:[#allocation6 + $0x2]]
    %s72 = scalar_lea.vmem [#allocation2], 2
    %v73 = vld [vmem:[%s72] ss:$4 sm:$0x3]
    %s74 = scalar_lea.vmem [#allocation2], 10
    %v75 = vld [vmem:[%s74] ss:$4 sm:$0x3]
    %v76 = vstv %s71
    %v77 = vmul.f32 %v76, %v73
    %v78 = vmul.f32 %v76, %v75
    %v79 = vadd.f32 %v69, %v77
    %v80 = vadd.f32 %v70, %v78
    %s81 = sld [smem:[#allocation6 + $0x3]]
    %s82 = scalar_lea.vmem [#allocation2], 3
    %v83 = vld [vmem:[%s82] ss:$4 sm:$0x3]
    %s84 = scalar_lea.vmem [#allocation2], 11
    %v85 = vld [vmem:[%s84] ss:$4 sm:$0x3]
    %v86 = vstv %s81
    %v87 = vmul.f32 %v86, %v83
    %v88 = vmul.f32 %v86, %v85
    %v89 = vadd.f32 %v79, %v87
    %v90 = vadd.f32 %v80, %v88
    %s91 = sld [smem:[#allocation7]]
    %v92 = vstv %s91
    %v93 = vadd.f32 %v89, %v92
    %v94 = vadd.f32 %v90, %v92
    %v95 = vmax.f32 %v93, 0.0
    %v96 = vmax.f32 %v94, 0.0
    %v97 = vlaneseq
    %vm98 = vcmp.ge.s32.totalorder %v97, 0
    %vm99 = vcmp.lt.s32.totalorder %v97, 256
    %vm100 = vmand %vm98, %vm99
    %101 = vst.msk [vmem:[#allocation9] ss:$8 sm:$0x3] %vm100, %v95
    %102 = vst.msk [vmem:[#allocation9] ss:$8 sm:$0x0] %vm100, %v95
    %s103 = scalar_lea.vmem [#allocation9], 16
    %104 = vst.msk [vmem:[%s103] ss:$8 sm:$0x3] %vm100, %v96
    %105 = vst.msk [vmem:[%s103] ss:$8 sm:$0x0] %vm100, %v96
    %s106 = sld [smem:[#allocation6 + $0x80]]
    %v107 = vld [vmem:[#allocation2] ss:$4 sm:$0x3]
    %v108 = vld [vmem:[%s56] ss:$4 sm:$0x3]
    %v109 = vstv %s106
    %v110 = vmul.f32 %v109, %v107
    %v111 = vmul.f32 %v109, %v108
    %s112 = sld [smem:[#allocation6 + $0x81]]
    %v113 = vld [vmem:[%s62] ss:$4 sm:$0x3]
    %v114 = vld [vmem:[%s64] ss:$4 sm:$0x3]
    %v115 = vstv %s112
    %v116 = vmul.f32 %v115, %v113
    %v117 = vmul.f32 %v115, %v114
    %v118 = vadd.f32 %v110, %v116
    %v119 = vadd.f32 %v111, %v117
    %s120 = sld [smem:[#allocation6 + $0x82]]
    %v121 = vld [vmem:[%s72] ss:$4 sm:$0x3]
    %v122 = vld [vmem:[%s74] ss:$4 sm:$0x3]
    %v123 = vstv %s120
    %v124 = vmul.f32 %v123, %v121
    %v125 = vmul.f32 %v123, %v122
    %v126 = vadd.f32 %v118, %v124
    %v127 = vadd.f32 %v119, %v125
    %s128 = sld [smem:[#allocation6 + $0x83]]
    %v129 = vld [vmem:[%s82] ss:$4 sm:$0x3]
    %v130 = vld [vmem:[%s84] ss:$4 sm:$0x3]
    %v131 = vstv %s128
    %v132 = vmul.f32 %v131, %v129
    %v133 = vmul.f32 %v131, %v130
    %v134 = vadd.f32 %v126, %v132
    %v135 = vadd.f32 %v127, %v133
    %s136 = sld [smem:[#allocation7 + $0x1]]
    %v137 = vstv %s136
    %v138 = vadd.f32 %v134, %v137
    %v139 = vadd.f32 %v135, %v137
    %v140 = vmax.f32 %v138, 0.0
    %v141 = vmax.f32 %v139, 0.0
    %s142 = scalar_lea.vmem [#allocation9], 1
    %143 = vst.msk [vmem:[%s142] ss:$8 sm:$0x3] %vm100, %v140
    %144 = vst.msk [vmem:[%s142] ss:$8 sm:$0x0] %vm100, %v140
    %s145 = scalar_lea.vmem [#allocation9], 17
    %146 = vst.msk [vmem:[%s145] ss:$8 sm:$0x3] %vm100, %v141
    %147 = vst.msk [vmem:[%s145] ss:$8 sm:$0x0] %vm100, %v141
    %s148 = sld [smem:[#allocation6 + $0x100]]
    %v149 = vld [vmem:[#allocation2] ss:$4 sm:$0x3]
    %v150 = vld [vmem:[%s56] ss:$4 sm:$0x3]
    %v151 = vstv %s148
    %v152 = vmul.f32 %v151, %v149
    %v153 = vmul.f32 %v151, %v150
    %s154 = sld [smem:[#allocation6 + $0x101]]
    %v155 = vld [vmem:[%s62] ss:$4 sm:$0x3]
    %v156 = vld [vmem:[%s64] ss:$4 sm:$0x3]
    %v157 = vstv %s154
    %v158 = vmul.f32 %v157, %v155
    %v159 = vmul.f32 %v157, %v156
    %v160 = vadd.f32 %v152, %v158
    %v161 = vadd.f32 %v153, %v159
    %s162 = sld [smem:[#allocation6 + $0x102]]
    %v163 = vld [vmem:[%s72] ss:$4 sm:$0x3]
    %v164 = vld [vmem:[%s74] ss:$4 sm:$0x3]
    %v165 = vstv %s162
    %v166 = vmul.f32 %v165, %v163
    %v167 = vmul.f32 %v165, %v164
    %v168 = vadd.f32 %v160, %v166
    %v169 = vadd.f32 %v161, %v167
    %s170 = sld [smem:[#allocation6 + $0x103]]
    %v171 = vld [vmem:[%s82] ss:$4 sm:$0x3]
    %v172 = vld [vmem:[%s84] ss:$4 sm:$0x3]
    %v173 = vstv %s170
    %v174 = vmul.f32 %v173, %v171
    %v175 = vmul.f32 %v173, %v172
    %v176 = vadd.f32 %v168, %v174
    %v177 = vadd.f32 %v169, %v175
    %s178 = sld [smem:[#allocation7 + $0x2]]
    %v179 = vstv %s178
    %v180 = vadd.f32 %v176, %v179
    %v181 = vadd.f32 %v177, %v179
    %v182 = vmax.f32 %v180, 0.0
    %v183 = vmax.f32 %v181, 0.0
    %s184 = scalar_lea.vmem [#allocation9], 2
    %185 = vst.msk [vmem:[%s184] ss:$8 sm:$0x3] %vm100, %v182
    %186 = vst.msk [vmem:[%s184] ss:$8 sm:$0x0] %vm100, %v182
    %s187 = scalar_lea.vmem [#allocation9], 18
    %188 = vst.msk [vmem:[%s187] ss:$8 sm:$0x3] %vm100, %v183
    %189 = vst.msk [vmem:[%s187] ss:$8 sm:$0x0] %vm100, %v183
    %s190 = sld [smem:[#allocation6 + $0x180]]
    %v191 = vld [vmem:[#allocation2] ss:$4 sm:$0x3]
    %v192 = vld [vmem:[%s56] ss:$4 sm:$0x3]
    %v193 = vstv %s190
    %v194 = vmul.f32 %v193, %v191
    %v195 = vmul.f32 %v193, %v192
    %s196 = sld [smem:[#allocation6 + $0x181]]
    %v197 = vld [vmem:[%s62] ss:$4 sm:$0x3]
    %v198 = vld [vmem:[%s64] ss:$4 sm:$0x3]
    %v199 = vstv %s196
    %v200 = vmul.f32 %v199, %v197
    %v201 = vmul.f32 %v199, %v198
    %v202 = vadd.f32 %v194, %v200
    %v203 = vadd.f32 %v195, %v201
    %s204 = sld [smem:[#allocation6 + $0x182]]
    %v205 = vld [vmem:[%s72] ss:$4 sm:$0x3]
    %v206 = vld [vmem:[%s74] ss:$4 sm:$0x3]
    %v207 = vstv %s204
    %v208 = vmul.f32 %v207, %v205
    %v209 = vmul.f32 %v207, %v206
    %v210 = vadd.f32 %v202, %v208
    %v211 = vadd.f32 %v203, %v209
    %s212 = sld [smem:[#allocation6 + $0x183]]
    %v213 = vld [vmem:[%s82] ss:$4 sm:$0x3]
    %v214 = vld [vmem:[%s84] ss:$4 sm:$0x3]
    %v215 = vstv %s212
    %v216 = vmul.f32 %v215, %v213
    %v217 = vmul.f32 %v215, %v214
    %v218 = vadd.f32 %v210, %v216
    %v219 = vadd.f32 %v211, %v217
    %s220 = sld [smem:[#allocation7 + $0x3]]
    %v221 = vstv %s220
    %v222 = vadd.f32 %v218, %v221
    %v223 = vadd.f32 %v219, %v221
    %v224 = vmax.f32 %v222, 0.0
    %v225 = vmax.f32 %v223, 0.0
    %s226 = scalar_lea.vmem [#allocation9], 3
    %227 = vst.msk [vmem:[%s226] ss:$8 sm:$0x3] %vm100, %v224
    %228 = vst.msk [vmem:[%s226] ss:$8 sm:$0x0] %vm100, %v224
    %s229 = scalar_lea.vmem [#allocation9], 19
    %230 = vst.msk [vmem:[%s229] ss:$8 sm:$0x3] %vm100, %v225
    %231 = vst.msk [vmem:[%s229] ss:$8 sm:$0x0] %vm100, %v225
    %s232 = sld [smem:[#allocation6 + $0x200]]
    %v233 = vld [vmem:[#allocation2] ss:$4 sm:$0x3]
    %v234 = vld [vmem:[%s56] ss:$4 sm:$0x3]
    %v235 = vstv %s232
    %v236 = vmul.f32 %v235, %v233
    %v237 = vmul.f32 %v235, %v234
    %s238 = sld [smem:[#allocation6 + $0x201]]
    %v239 = vld [vmem:[%s62] ss:$4 sm:$0x3]
    %v240 = vld [vmem:[%s64] ss:$4 sm:$0x3]
    %v241 = vstv %s238
    %v242 = vmul.f32 %v241, %v239
    %v243 = vmul.f32 %v241, %v240
    %v244 = vadd.f32 %v236, %v242
    %v245 = vadd.f32 %v237, %v243
    %s246 = sld [smem:[#allocation6 + $0x202]]
    %v247 = vld [vmem:[%s72] ss:$4 sm:$0x3]
    %v248 = vld [vmem:[%s74] ss:$4 sm:$0x3]
    %v249 = vstv %s246
    %v250 = vmul.f32 %v249, %v247
    %v251 = vmul.f32 %v249, %v248
    %v252 = vadd.f32 %v244, %v250
    %v253 = vadd.f32 %v245, %v251
    %s254 = sld [smem:[#allocation6 + $0x203]]
    %v255 = vld [vmem:[%s82] ss:$4 sm:$0x3]
    %v256 = vld [vmem:[%s84] ss:$4 sm:$0x3]
    %v257 = vstv %s254
    %v258 = vmul.f32 %v257, %v255
    %v259 = vmul.f32 %v257, %v256
    %v260 = vadd.f32 %v252, %v258
    %v261 = vadd.f32 %v253, %v259
    %s262 = sld [smem:[#allocation7 + $0x4]]
    %v263 = vstv %s262
    %v264 = vadd.f32 %v260, %v263
    %v265 = vadd.f32 %v261, %v263
    %v266 = vmax.f32 %v264, 0.0
    %v267 = vmax.f32 %v265, 0.0
    %s268 = scalar_lea.vmem [#allocation9], 4
    %269 = vst.msk [vmem:[%s268] ss:$8 sm:$0x3] %vm100, %v266
    %270 = vst.msk [vmem:[%s268] ss:$8 sm:$0x0] %vm100, %v266
    %s271 = scalar_lea.vmem [#allocation9], 20
    %272 = vst.msk [vmem:[%s271] ss:$8 sm:$0x3] %vm100, %v267
    %273 = vst.msk [vmem:[%s271] ss:$8 sm:$0x0] %vm100, %v267
    %s274 = sld [smem:[#allocation6 + $0x280]]
    %v275 = vld [vmem:[#allocation2] ss:$4 sm:$0x3]
    %v276 = vld [vmem:[%s56] ss:$4 sm:$0x3]
    %v277 = vstv %s274
    %v278 = vmul.f32 %v277, %v275
    %v279 = vmul.f32 %v277, %v276
    %s280 = sld [smem:[#allocation6 + $0x281]]
    %v281 = vld [vmem:[%s62] ss:$4 sm:$0x3]
    %v282 = vld [vmem:[%s64] ss:$4 sm:$0x3]
    %v283 = vstv %s280
    %v284 = vmul.f32 %v283, %v281
    %v285 = vmul.f32 %v283, %v282
    %v286 = vadd.f32 %v278, %v284
    %v287 = vadd.f32 %v279, %v285
    %s288 = sld [smem:[#allocation6 + $0x282]]
    %v289 = vld [vmem:[%s72] ss:$4 sm:$0x3]
    %v290 = vld [vmem:[%s74] ss:$4 sm:$0x3]
    %v291 = vstv %s288
    %v292 = vmul.f32 %v291, %v289
    %v293 = vmul.f32 %v291, %v290
    %v294 = vadd.f32 %v286, %v292
    %v295 = vadd.f32 %v287, %v293
    %s296 = sld [smem:[#allocation6 + $0x283]]
    %v297 = vld [vmem:[%s82] ss:$4 sm:$0x3]
    %v298 = vld [vmem:[%s84] ss:$4 sm:$0x3]
    %v299 = vstv %s296
    %v300 = vmul.f32 %v299, %v297
    %v301 = vmul.f32 %v299, %v298
    %v302 = vadd.f32 %v294, %v300
    %v303 = vadd.f32 %v295, %v301
    %s304 = sld [smem:[#allocation7 + $0x5]]
    %v305 = vstv %s304
    %v306 = vadd.f32 %v302, %v305
    %v307 = vadd.f32 %v303, %v305
    %v308 = vmax.f32 %v306, 0.0
    %v309 = vmax.f32 %v307, 0.0
    %s310 = scalar_lea.vmem [#allocation9], 5
    %311 = vst.msk [vmem:[%s310] ss:$8 sm:$0x3] %vm100, %v308
    %312 = vst.msk [vmem:[%s310] ss:$8 sm:$0x0] %vm100, %v308
    %s313 = scalar_lea.vmem [#allocation9], 21
    %314 = vst.msk [vmem:[%s313] ss:$8 sm:$0x3] %vm100, %v309
    %315 = vst.msk [vmem:[%s313] ss:$8 sm:$0x0] %vm100, %v309
    %s316 = sld [smem:[#allocation6 + $0x300]]
    %v317 = vld [vmem:[#allocation2] ss:$4 sm:$0x3]
    %v318 = vld [vmem:[%s56] ss:$4 sm:$0x3]
    %v319 = vstv %s316
    %v320 = vmul.f32 %v319, %v317
    %v321 = vmul.f32 %v319, %v318
    %s322 = sld [smem:[#allocation6 + $0x301]]
    %v323 = vld [vmem:[%s62] ss:$4 sm:$0x3]
    %v324 = vld [vmem:[%s64] ss:$4 sm:$0x3]
    %v325 = vstv %s322
    %v326 = vmul.f32 %v325, %v323
    %v327 = vmul.f32 %v325, %v324
    %v328 = vadd.f32 %v320, %v326
    %v329 = vadd.f32 %v321, %v327
    %s330 = sld [smem:[#allocation6 + $0x302]]
    %v331 = vld [vmem:[%s72] ss:$4 sm:$0x3]
    %v332 = vld [vmem:[%s74] ss:$4 sm:$0x3]
    %v333 = vstv %s330
    %v334 = vmul.f32 %v333, %v331
    %v335 = vmul.f32 %v333, %v332
    %v336 = vadd.f32 %v328, %v334
    %v337 = vadd.f32 %v329, %v335
    %s338 = sld [smem:[#allocation6 + $0x303]]
    %v339 = vld [vmem:[%s82] ss:$4 sm:$0x3]
    %v340 = vld [vmem:[%s84] ss:$4 sm:$0x3]
    %v341 = vstv %s338
    %v342 = vmul.f32 %v341, %v339
    %v343 = vmul.f32 %v341, %v340
    %v344 = vadd.f32 %v336, %v342
    %v345 = vadd.f32 %v337, %v343
    %s346 = sld [smem:[#allocation7 + $0x6]]
    %v347 = vstv %s346
    %v348 = vadd.f32 %v344, %v347
    %v349 = vadd.f32 %v345, %v347
    %v350 = vmax.f32 %v348, 0.0
    %v351 = vmax.f32 %v349, 0.0
    %s352 = scalar_lea.vmem [#allocation9], 6
    %353 = vst.msk [vmem:[%s352] ss:$8 sm:$0x3] %vm100, %v350
    %354 = vst.msk [vmem:[%s352] ss:$8 sm:$0x0] %vm100, %v350
    %s355 = scalar_lea.vmem [#allocation9], 22
    %356 = vst.msk [vmem:[%s355] ss:$8 sm:$0x3] %vm100, %v351
    %357 = vst.msk [vmem:[%s355] ss:$8 sm:$0x0] %vm100, %v351
    %s358 = sld [smem:[#allocation6 + $0x380]]
    %v359 = vld [vmem:[#allocation2] ss:$4 sm:$0x3]
    %v360 = vld [vmem:[%s56] ss:$4 sm:$0x3]
    %v361 = vstv %s358
    %v362 = vmul.f32 %v361, %v359
    %v363 = vmul.f32 %v361, %v360
    %s364 = sld [smem:[#allocation6 + $0x381]]
    %v365 = vld [vmem:[%s62] ss:$4 sm:$0x3]
    %v366 = vld [vmem:[%s64] ss:$4 sm:$0x3]
    %v367 = vstv %s364
    %v368 = vmul.f32 %v367, %v365
    %v369 = vmul.f32 %v367, %v366
    %v370 = vadd.f32 %v362, %v368
    %v371 = vadd.f32 %v363, %v369
    %s372 = sld [smem:[#allocation6 + $0x382]]
    %v373 = vld [vmem:[%s72] ss:$4 sm:$0x3]
    %v374 = vld [vmem:[%s74] ss:$4 sm:$0x3]
    %v375 = vstv %s372
    %v376 = vmul.f32 %v375, %v373
    %v377 = vmul.f32 %v375, %v374
    %v378 = vadd.f32 %v370, %v376
    %v379 = vadd.f32 %v371, %v377
    %s380 = sld [smem:[#allocation6 + $0x383]]
    %v381 = vld [vmem:[%s82] ss:$4 sm:$0x3]
    %v382 = vld [vmem:[%s84] ss:$4 sm:$0x3]
    %v383 = vstv %s380
    %v384 = vmul.f32 %v383, %v381
    %v385 = vmul.f32 %v383, %v382
    %v386 = vadd.f32 %v378, %v384
    %v387 = vadd.f32 %v379, %v385
    %s388 = sld [smem:[#allocation7 + $0x7]]
    %v389 = vstv %s388
    %v390 = vadd.f32 %v386, %v389
    %v391 = vadd.f32 %v387, %v389
    %v392 = vmax.f32 %v390, 0.0
    %v393 = vmax.f32 %v391, 0.0
    %s394 = scalar_lea.vmem [#allocation9], 7
    %395 = vst.msk [vmem:[%s394] ss:$8 sm:$0x3] %vm100, %v392
    %396 = vst.msk [vmem:[%s394] ss:$8 sm:$0x0] %vm100, %v392
    %s397 = scalar_lea.vmem [#allocation9], 23
    %398 = vst.msk [vmem:[%s397] ss:$8 sm:$0x3] %vm100, %v393
    %399 = vst.msk [vmem:[%s397] ss:$8 sm:$0x0] %vm100, %v393
    // Predicated region
    $region26: #{tpu_custom_call.1} parent=1 // pred_check
      _
    $region27: #{tpu_custom_call.1} parent=1 // pred_check_branch
      %401 = sbr.rel (0) target = $region29
    $region28: #{tpu_custom_call.1} parent=1 // pred_region
      %s403 = ssub.s32 512, 512
      %404 = vsyncadd [#allocation4], %s403
      %s405 = sshll.u32 [#allocation9], 4
      %s406 = int_to_ptr.vmem [resolvable:$true] %s405
      %411 = dma.vmem_to_hbm [thread:$0]  %s406, 512, %s3, [#allocation4], 256, 256, 16
    $region29: #{tpu_custom_call.1} parent=1 // pred_fallthru
      _
    // Predicated region
    $region30: #{tpu_custom_call.1} parent=1 // pred_check
      _
    $region31: #{tpu_custom_call.1} parent=1 // pred_check_branch
      %413 = sbr.rel (0) target = $region33
    $region32: #{tpu_custom_call.1} parent=1 // pred_region
      %414 = dma.done [#allocation4], 512
    $region33: #{tpu_custom_call.1} parent=1 // pred_fallthru
      _
    %415 = vsyncpa [#allocation3], 1
    %416 = vsyncpa [#allocation4], 1
    %417 = vsyncpa [#allocation5], 1
    %418 = vsyncpa [#allocation8], 1

</llo_original>
